<compile_context>
chip_gen: v5e
topology: v5e:2x2
jax: 0.10.0
libtpu: 0.0.40
codegen_flags: <defaults>
</compile_context>

<pallas_src>
import functools

import jax
import jax.numpy as jnp
from jax import lax
from jax.experimental import pallas as pl
from jax.experimental.pallas import tpu as pltpu


def _round_up(x: int, m: int) -> int:
    return ((x + m - 1) // m) * m


def _cdiv(a: int, b: int) -> int:
    return -(-a // b)


def _barlow_twins_kernel(za_ref, zb_ref, pa_ref, qa_ref, pb_ref, qb_ref,
                         out_ref, gram_ref, loss_ref,
                         *, lambda_param: float, d_true: int, tile_d: int,
                         d_is_padded: bool):
    di = pl.program_id(0)
    dj = pl.program_id(1)
    k = pl.program_id(2)
    nj = pl.num_programs(1)
    nk = pl.num_programs(2)

    # Per-di scalar loss accumulator: zero at the start of this di's work.
    @pl.when((dj == 0) & (k == 0))
    def _():
        loss_ref[...] = jnp.zeros_like(loss_ref)

    # Per-(di, dj) Gram accumulator: zero at the start of the N reduction.
    @pl.when(k == 0)
    def _():
        gram_ref[...] = jnp.zeros_like(gram_ref)

    # Raw Gram: contract the batch dim of both operands (no explicit .T).
    # Raw (possibly bf16) tiles feed the MXU directly; accumulation is f32.
    gram_ref[...] += lax.dot_general(
        za_ref[...], zb_ref[...],
        dimension_numbers=(((0,), (0,)), ((), ())),
        preferred_element_type=jnp.float32)

    # Finalize this (di, dj) output tile once the whole batch has streamed.
    @pl.when(k == nk - 1)
    def _():
        # Outer products of the precomputed per-column vectors on the MXU
        # (K=1 matmuls, same dimension_numbers -> no lane<->sublane transpose).
        outer_dims = (((0,), (0,)), ((), ()))
        scale = lax.dot_general(pa_ref[...], pb_ref[...], outer_dims,
                                preferred_element_type=jnp.float32)
        mean_corr = lax.dot_general(qa_ref[...], qb_ref[...], outer_dims,
                                    preferred_element_type=jnp.float32)

        # c[i,j] = G[i,j] * (inv_sig_a[i]/N) * inv_sig_b[j]
        #          - (mu_a[i] inv_sig_a[i]) * (mu_b[j] inv_sig_b[j])
        # Padded columns: pa/qa/pb/qb are zero there -> c == 0 exactly.
        c = gram_ref[...] * scale - mean_corr

        lam = jnp.float32(lambda_param)
        c_sq = c * c

        # Every element first contributes lambda * c^2 (padded entries are 0).
        loss_ref[...] += lam * jnp.sum(c_sq, keepdims=True)

        # Block-diagonal tiles add the per-diagonal correction
        # (c-1)^2 - lambda c^2 = (1-lambda) c^2 - 2 c + 1  (no D x D eye).
        @pl.when(di == dj)
        def _():
            li = lax.broadcasted_iota(jnp.int32, (tile_d, tile_d), 0)
            lj = lax.broadcasted_iota(jnp.int32, (tile_d, tile_d), 1)
            diag = li == lj
            if d_is_padded:
                diag = diag & (di * tile_d + li < d_true)
                n_diag = jnp.minimum(
                    jnp.int32(tile_d),
                    jnp.int32(d_true) - di * tile_d).astype(jnp.float32)
            else:
                n_diag = jnp.float32(tile_d)
            diag_c = jnp.where(diag, c, 0.0)
            diag_c2 = jnp.where(diag, c_sq, 0.0)
            loss_ref[...] += ((1.0 - lam) * jnp.sum(diag_c2, keepdims=True)
                              - 2.0 * jnp.sum(diag_c, keepdims=True)
                              + n_diag)

    # Store this di's partial loss once, into a lane-dense output row.
    @pl.when((dj == nj - 1) & (k == nk - 1))
    def _():
        out_ref[...] = jnp.broadcast_to(loss_ref[...].reshape(1, 1, 1),
                                        (1, 8, 128))


def _pick_tiles(n: int, d: int, itemsize: int):
    # Feature-dim tiling: cap tile_d at 1024 (worst-case VMEM stays well under
    # v7x's 64 MiB per-TC) while minimizing column padding.
    d128 = _round_up(d, 128)
    n_dt = _cdiv(d128, 1024)
    tile_d = _round_up(_cdiv(d128, n_dt), 128)
    d_pad = tile_d * n_dt

    # Batch tiling: large k-tiles raise arithmetic intensity (fewer Gram
    # read-modify-writes per MXU flop) and cut per-step grid overhead, while
    # row padding stays below one sublane group.
    row_align = 16 if itemsize == 2 else 8
    target = 2048 if itemsize == 2 else 1024
    n_kt = max(1, _cdiv(n, target))
    tile_n = _round_up(_cdiv(n, n_kt), row_align)
    n_pad = tile_n * n_kt
    return tile_n, n_pad, tile_d, d_pad, n_dt, n_kt


def barlow_twins_loss(z_a: jax.Array, z_b: jax.Array,
                      lambda_param: float = 0.005,
                      use_bf16: bool = False) -> jax.Array:
    """Pallas TPU implementation of BarlowTwinsLoss.forward (gather_distributed=False)."""
    assert z_a.ndim == 2 and z_a.shape == z_b.shape
    n, d = z_a.shape

    # Column statistics, two-pass, f32, computed once in the wrapper (one cheap
    # memory-bound pass vs. redundant per-grid-step VPU/XLU work in the kernel).
    # Note: n == 1 yields inf/NaN, matching torch.std(ddof=1) semantics.
    za_f = z_a.astype(jnp.float32)
    zb_f = z_b.astype(jnp.float32)
    mu_a = jnp.mean(za_f, axis=0)
    mu_b = jnp.mean(zb_f, axis=0)
    var_a = jnp.sum((za_f - mu_a) ** 2, axis=0) / jnp.float32(n - 1)
    var_b = jnp.sum((zb_f - mu_b) ** 2, axis=0) / jnp.float32(n - 1)
    inv_sig_a = 1.0 / jnp.sqrt(var_a)
    inv_sig_b = 1.0 / jnp.sqrt(var_b)

    if use_bf16:
        # MXU-native streaming dtype; Gram accumulation and stats stay f32.
        z_a = z_a.astype(jnp.bfloat16)
        z_b = z_b.astype(jnp.bfloat16)
    itemsize = jnp.dtype(z_a.dtype).itemsize

    tile_n, n_pad, tile_d, d_pad, n_dt, n_kt = _pick_tiles(n, d, itemsize)

    # Per-column vectors with 1/N folded into pa. Padded columns get zeros so
    # padded entries of c are exactly zero (no NaNs, no off-diagonal masking).
    pa = (inv_sig_a / jnp.float32(n)).reshape(1, d)
    qa = (mu_a * inv_sig_a).reshape(1, d)
    pb = inv_sig_b.reshape(1, d)
    qb = (mu_b * inv_sig_b).reshape(1, d)
    if d_pad != d:
        cpad = ((0, 0), (0, d_pad - d))
        pa, qa, pb, qb = (jnp.pad(v, cpad) for v in (pa, qa, pb, qb))

    if (n_pad, d_pad) != (n, d):
        # Zero rows/columns contribute nothing to the raw Gram.
        pad = ((0, n_pad - n), (0, d_pad - d))
        z_a = jnp.pad(z_a, pad)
        z_b = jnp.pad(z_b, pad)

    kernel = functools.partial(
        _barlow_twins_kernel,
        lambda_param=float(lambda_param),
        d_true=d, tile_d=tile_d,
        d_is_padded=(d_pad != d))

    # Explicit VMEM budget: Gram accumulator + double-buffered input blocks
    # + stats blocks + output block + headroom; clamped so it is safe on v7x.
    vmem_needed = (tile_d * tile_d * 4
                   + 2 * 2 * tile_n * tile_d * itemsize
                   + 4 * 2 * tile_d * 4
                   + 2 * 8 * 128 * 4
                   + 4)
    vmem_limit = int(min(max(vmem_needed + (8 << 20), 32 << 20), 60 << 20))

    out = pl.pallas_call(
        kernel,
        out_shape=jax.ShapeDtypeStruct((n_dt, 8, 128), jnp.float32),
        grid_spec=pltpu.PrefetchScalarGridSpec(
            num_scalar_prefetch=0,
            grid=(n_dt, n_dt, n_kt),
            in_specs=[
                pl.BlockSpec((tile_n, tile_d), lambda di, dj, k: (k, di)),
                pl.BlockSpec((tile_n, tile_d), lambda di, dj, k: (k, dj)),
                pl.BlockSpec((1, tile_d), lambda di, dj, k: (0, di)),  # pa
                pl.BlockSpec((1, tile_d), lambda di, dj, k: (0, di)),  # qa
                pl.BlockSpec((1, tile_d), lambda di, dj, k: (0, dj)),  # pb
                pl.BlockSpec((1, tile_d), lambda di, dj, k: (0, dj)),  # qb
            ],
            out_specs=pl.BlockSpec((1, 8, 128), lambda di, dj, k: (di, 0, 0)),
            scratch_shapes=[
                pltpu.VMEM((tile_d, tile_d), jnp.float32),  # Gram accumulator
                pltpu.VMEM((1, 1), jnp.float32),            # per-di loss accum
            ],
        ),
        compiler_params=pltpu.CompilerParams(
            dimension_semantics=("parallel", "arbitrary", "arbitrary"),
            vmem_limit_bytes=vmem_limit),
        cost_estimate=pl.CostEstimate(
            flops=2 * n_pad * d_pad * d_pad,
            transcendentals=0,
            bytes_accessed=2 * n_dt * n_pad * d_pad * itemsize
                           + n_dt * 8 * 128 * 4),
    )(z_a, z_b, pa, qa, pb, qb)

    return jnp.sum(out[:, 0, 0])


def _reference_loss(z_a, z_b, lambda_param=0.005):
    """Pure-JAX reference mirroring the PyTorch forward (for verification)."""
    n, d = z_a.shape
    za = z_a.astype(jnp.float32)
    zb = z_b.astype(jnp.float32)
    za_n = (za - za.mean(0)) / jnp.std(za, axis=0, ddof=1)
    zb_n = (zb - zb.mean(0)) / jnp.std(zb, axis=0, ddof=1)
    c = (za_n.T @ zb_n) / n
    eye = jnp.eye(d, dtype=jnp.float32)
    c_diff = (c - eye) ** 2
    c_diff = jnp.where(eye > 0.0, c_diff, c_diff * lambda_param)
    return c_diff.sum()


if __name__ == "__main__":
    key = jax.random.PRNGKey(0)
    k0, k1, k2, k3 = jax.random.split(key, 4)

    # Small shapes consistent with the module: batch N=8, embedding dim D=32.
    N, D = 8, 32
    z_a = jax.random.normal(k0, (N, D), dtype=jnp.float32)
    z_b = jax.random.normal(k1, (N, D), dtype=jnp.float32)
    loss = jax.block_until_ready(barlow_twins_loss(z_a, z_b, lambda_param=0.005))
    ref = _reference_loss(z_a, z_b, lambda_param=0.005)
    assert jnp.allclose(loss, ref, rtol=1e-4, atol=1e-4), (loss, ref)

    # Multi-tile + padded-D case exercising the (di, dj, k) grid, block-diagonal
    # padding mask and the megacore-friendly per-di partial output.
    N2, D2 = 200, 1300
    z_a2 = jax.random.normal(k2, (N2, D2), dtype=jnp.float32)
    z_b2 = jax.random.normal(k3, (N2, D2), dtype=jnp.float32)
    loss2 = jax.block_until_ready(barlow_twins_loss(z_a2, z_b2, lambda_param=0.005))
    ref2 = _reference_loss(z_a2, z_b2, lambda_param=0.005)
    assert jnp.allclose(loss2, ref2, rtol=1e-3, atol=1e-3), (loss2, ref2)

    # bf16 fast path: data streamed in bf16, accumulation/stats in f32.
    loss3 = jax.block_until_ready(
        barlow_twins_loss(z_a2, z_b2, lambda_param=0.005, use_bf16=True))
    assert jnp.allclose(loss3, ref2, rtol=5e-2, atol=5e-2), (loss3, ref2)

    print("KERNEL_OK")
</pallas_src>

<mosaic_0001>
module attributes {stable_mosaic.version = 11 : i64} {
  func.func @_barlow_twins_kernel(%arg0: i32, %arg1: i32, %arg2: i32, %arg3: memref<8x128xf32, #tpu.memory_space<vmem>>, %arg4: memref<8x128xf32, #tpu.memory_space<vmem>>, %arg5: memref<1x128xf32, #tpu.memory_space<vmem>>, %arg6: memref<1x128xf32, #tpu.memory_space<vmem>>, %arg7: memref<1x128xf32, #tpu.memory_space<vmem>>, %arg8: memref<1x128xf32, #tpu.memory_space<vmem>>, %arg9: memref<1x8x128xf32, #tpu.memory_space<vmem>>, %arg10: memref<128x128xf32, #tpu.memory_space<vmem>>, %arg11: memref<1x1xf32, #tpu.memory_space<vmem>>) attributes {dimension_semantics = [#tpu.dimension_semantics<parallel>, #tpu.dimension_semantics<arbitrary>, #tpu.dimension_semantics<arbitrary>], iteration_bounds = array<i64: 1, 1, 1>, scalar_prefetch = 0 : i64, scratch_operands = 2 : i64, tpu.core_type = #tpu.core_type<tc>, window_params = [{transform_indices = @transform_0, window_bounds = array<i64: 8, 128>}, {transform_indices = @transform_1, window_bounds = array<i64: 8, 128>}, {transform_indices = @transform_2, window_bounds = array<i64: 1, 128>}, {transform_indices = @transform_3, window_bounds = array<i64: 1, 128>}, {transform_indices = @transform_4, window_bounds = array<i64: 1, 128>}, {transform_indices = @transform_5, window_bounds = array<i64: 1, 128>}, {transform_indices = @transform_6, window_bounds = array<i64: 1, 8, 128>}]} {
    %c0_i32 = arith.constant 0 : i32
    %0 = arith.cmpi eq, %arg1, %c0_i32 : i32
    %c0_i32_0 = arith.constant 0 : i32
    %1 = arith.cmpi eq, %arg2, %c0_i32_0 : i32
    %2 = arith.andi %0, %1 : i1
    %3 = arith.extui %2 : i1 to i32
    %c0_i32_1 = arith.constant 0 : i32
    %4 = arith.cmpi ne, %3, %c0_i32_1 : i32
    scf.if %4 {
      %cst_16 = arith.constant 0.000000e+00 : f32
      %22 = vector.broadcast %cst_16 : f32 to vector<1x1xf32>
      %c0_17 = arith.constant 0 : index
      %c0_18 = arith.constant 0 : index
      %23 = vector.load %arg11[%c0_17, %c0_18] : memref<1x1xf32, #tpu.memory_space<vmem>>, vector<1x1xf32>
      tpu.vector_store %arg11[%c0_17, %c0_18], %22 {strides = array<i32>} : memref<1x1xf32, #tpu.memory_space<vmem>>, vector<1x1xf32>,
    } else {
    }
    %c0_i32_2 = arith.constant 0 : i32
    %5 = arith.cmpi eq, %arg2, %c0_i32_2 : i32
    %6 = arith.extui %5 : i1 to i32
    %c0_i32_3 = arith.constant 0 : i32
    %7 = arith.cmpi ne, %6, %c0_i32_3 : i32
    scf.if %7 {
      %cst_16 = arith.constant 0.000000e+00 : f32
      %22 = vector.broadcast %cst_16 : f32 to vector<128x128xf32>
      %c0_17 = arith.constant 0 : index
      %c0_18 = arith.constant 0 : index
      %23 = vector.load %arg10[%c0_17, %c0_18] : memref<128x128xf32, #tpu.memory_space<vmem>>, vector<128x128xf32>
      tpu.vector_store %arg10[%c0_17, %c0_18], %22 {strides = array<i32>} : memref<128x128xf32, #tpu.memory_space<vmem>>, vector<128x128xf32>,
    } else {
    }
    %c0 = arith.constant 0 : index
    %c0_4 = arith.constant 0 : index
    %8 = vector.load %arg10[%c0, %c0_4] : memref<128x128xf32, #tpu.memory_space<vmem>>, vector<128x128xf32>
    %c0_5 = arith.constant 0 : index
    %c0_6 = arith.constant 0 : index
    %9 = vector.load %arg3[%c0_5, %c0_6] : memref<8x128xf32, #tpu.memory_space<vmem>>, vector<8x128xf32>
    %c0_7 = arith.constant 0 : index
    %c0_8 = arith.constant 0 : index
    %10 = vector.load %arg4[%c0_7, %c0_8] : memref<8x128xf32, #tpu.memory_space<vmem>>, vector<8x128xf32>
    %cst = arith.constant dense<0.000000e+00> : vector<128x128xf32>
    %11 = tpu.matmul %9, %10, %cst {dimension_numbers = #tpu.dot_dimension_numbers<[0], [0], [1], [1], [0, 1, 1, 1], [], []>} : vector<8x128xf32>, vector<8x128xf32>, vector<128x128xf32> -> vector<128x128xf32>
    %12 = arith.addf %8, %11 : vector<128x128xf32>
    %c0_9 = arith.constant 0 : index
    %c0_10 = arith.constant 0 : index
    %13 = vector.load %arg10[%c0_9, %c0_10] : memref<128x128xf32, #tpu.memory_space<vmem>>, vector<128x128xf32>
    tpu.vector_store %arg10[%c0_9, %c0_10], %12 {strides = array<i32>} : memref<128x128xf32, #tpu.memory_space<vmem>>, vector<128x128xf32>,
    %c0_i32_11 = arith.constant 0 : i32
    %14 = arith.cmpi eq, %arg2, %c0_i32_11 : i32
    %15 = arith.extui %14 : i1 to i32
    %c0_i32_12 = arith.constant 0 : i32
    %16 = arith.cmpi ne, %15, %c0_i32_12 : i32
    scf.if %16 {
      %c0_16 = arith.constant 0 : index
      %c0_17 = arith.constant 0 : index
      %22 = vector.load %arg5[%c0_16, %c0_17] : memref<1x128xf32, #tpu.memory_space<vmem>>, vector<1x128xf32>
      %c0_18 = arith.constant 0 : index
      %c0_19 = arith.constant 0 : index
      %23 = vector.load %arg7[%c0_18, %c0_19] : memref<1x128xf32, #tpu.memory_space<vmem>>, vector<1x128xf32>
      %cst_20 = arith.constant dense<0.000000e+00> : vector<128x128xf32>
      %24 = tpu.matmul %22, %23, %cst_20 {dimension_numbers = #tpu.dot_dimension_numbers<[0], [0], [1], [1], [0, 1, 1, 1], [], []>} : vector<1x128xf32>, vector<1x128xf32>, vector<128x128xf32> -> vector<128x128xf32>
      %c0_21 = arith.constant 0 : index
      %c0_22 = arith.constant 0 : index
      %25 = vector.load %arg6[%c0_21, %c0_22] : memref<1x128xf32, #tpu.memory_space<vmem>>, vector<1x128xf32>
      %c0_23 = arith.constant 0 : index
      %c0_24 = arith.constant 0 : index
      %26 = vector.load %arg8[%c0_23, %c0_24] : memref<1x128xf32, #tpu.memory_space<vmem>>, vector<1x128xf32>
      %cst_25 = arith.constant dense<0.000000e+00> : vector<128x128xf32>
      %27 = tpu.matmul %25, %26, %cst_25 {dimension_numbers = #tpu.dot_dimension_numbers<[0], [0], [1], [1], [0, 1, 1, 1], [], []>} : vector<1x128xf32>, vector<1x128xf32>, vector<128x128xf32> -> vector<128x128xf32>
      %c0_26 = arith.constant 0 : index
      %c0_27 = arith.constant 0 : index
      %28 = vector.load %arg10[%c0_26, %c0_27] : memref<128x128xf32, #tpu.memory_space<vmem>>, vector<128x128xf32>
      %29 = arith.mulf %28, %24 : vector<128x128xf32>
      %30 = arith.subf %29, %27 : vector<128x128xf32>
      %31 = arith.mulf %30, %30 : vector<128x128xf32>
      %c0_28 = arith.constant 0 : index
      %c0_29 = arith.constant 0 : index
      %32 = vector.load %arg11[%c0_28, %c0_29] : memref<1x1xf32, #tpu.memory_space<vmem>>, vector<1x1xf32>
      %33 = vector.shape_cast %31 : vector<128x128xf32> to vector<1x128x128xf32>
      %cst_30 = arith.constant dense<0.000000e+00> : vector<1xf32>
      %34 = vector.multi_reduction <add>, %33, %cst_30 [1, 2] : vector<1x128x128xf32> to vector<1xf32>
      %35 = vector.shape_cast %34 : vector<1xf32> to vector<1x1x1xf32>
      %36 = vector.extract %35[0, 0, 0] : f32 from vector<1x1x1xf32>
      %37 = vector.broadcast %36 : f32 to vector<1x1xf32>
      %cst_31 = arith.constant 5.000000e-03 : f32
      %38 = vector.broadcast %cst_31 : f32 to vector<1x1xf32>
      %39 = arith.mulf %38, %37 : vector<1x1xf32>
      %40 = arith.addf %32, %39 : vector<1x1xf32>
      %c0_32 = arith.constant 0 : index
      %c0_33 = arith.constant 0 : index
      %41 = vector.load %arg11[%c0_32, %c0_33] : memref<1x1xf32, #tpu.memory_space<vmem>>, vector<1x1xf32>
      tpu.vector_store %arg11[%c0_32, %c0_33], %40 {strides = array<i32>} : memref<1x1xf32, #tpu.memory_space<vmem>>, vector<1x1xf32>,
      %42 = arith.cmpi eq, %arg0, %arg1 : i32
      %43 = arith.extui %42 : i1 to i32
      %cst_34 = arith.constant 5.000000e-03 : f32
      %c0_i32_35 = arith.constant 0 : i32
      %44 = arith.cmpi ne, %43, %c0_i32_35 : i32
      scf.if %44 {
        %45 = tpu.iota {dimensions = array<i32: 0>} : vector<128x128xi32>
        %46 = tpu.iota {dimensions = array<i32: 1>} : vector<128x128xi32>
        %47 = arith.cmpi eq, %45, %46 : vector<128x128xi32>
        %c128_i32 = arith.constant 128 : i32
        %48 = arith.muli %arg0, %c128_i32 : i32
        %49 = vector.broadcast %48 : i32 to vector<128x128xi32>
        %50 = arith.addi %49, %45 : vector<128x128xi32>
        %c32_i32 = arith.constant 32 : i32
        %51 = vector.broadcast %c32_i32 : i32 to vector<128x128xi32>
        %52 = arith.cmpi slt, %50, %51 : vector<128x128xi32>
        %53 = arith.andi %47, %52 : vector<128x128xi1>
        %c128_i32_36 = arith.constant 128 : i32
        %54 = arith.muli %arg0, %c128_i32_36 : i32
        %c32_i32_37 = arith.constant 32 : i32
        %55 = arith.subi %c32_i32_37, %54 : i32
        %c128_i32_38 = arith.constant 128 : i32
        %56 = arith.minsi %c128_i32_38, %55 : i32
        %57 = arith.sitofp %56 : i32 to f32
        %cst_39 = arith.constant 0.000000e+00 : f32
        %58 = vector.broadcast %cst_39 : f32 to vector<128x128xf32>
        %59 = arith.select %53, %30, %58 : vector<128x128xi1>, vector<128x128xf32>
        %cst_40 = arith.constant 0.000000e+00 : f32
        %60 = vector.broadcast %cst_40 : f32 to vector<128x128xf32>
        %61 = arith.select %53, %31, %60 : vector<128x128xi1>, vector<128x128xf32>
        %c0_41 = arith.constant 0 : index
        %c0_42 = arith.constant 0 : index
        %62 = vector.load %arg11[%c0_41, %c0_42] : memref<1x1xf32, #tpu.memory_space<vmem>>, vector<1x1xf32>
        %cst_43 = arith.constant 1.000000e+00 : f32
        %63 = arith.subf %cst_43, %cst_34 : f32
        %64 = vector.shape_cast %61 : vector<128x128xf32> to vector<1x128x128xf32>
        %cst_44 = arith.constant dense<0.000000e+00> : vector<1xf32>
        %65 = vector.multi_reduction <add>, %64, %cst_44 [1, 2] : vector<1x128x128xf32> to vector<1xf32>
        %66 = vector.shape_cast %65 : vector<1xf32> to vector<1x1x1xf32>
        %67 = vector.extract %66[0, 0, 0] : f32 from vector<1x1x1xf32>
        %68 = vector.broadcast %67 : f32 to vector<1x1xf32>
        %69 = vector.broadcast %63 : f32 to vector<1x1xf32>
        %70 = arith.mulf %69, %68 : vector<1x1xf32>
        %71 = vector.shape_cast %59 : vector<128x128xf32> to vector<1x128x128xf32>
        %cst_45 = arith.constant dense<0.000000e+00> : vector<1xf32>
        %72 = vector.multi_reduction <add>, %71, %cst_45 [1, 2] : vector<1x128x128xf32> to vector<1xf32>
        %73 = vector.shape_cast %72 : vector<1xf32> to vector<1x1x1xf32>
        %74 = vector.extract %73[0, 0, 0] : f32 from vector<1x1x1xf32>
        %75 = vector.broadcast %74 : f32 to vector<1x1xf32>
        %cst_46 = arith.constant 2.000000e+00 : f32
        %76 = vector.broadcast %cst_46 : f32 to vector<1x1xf32>
        %77 = arith.mulf %76, %75 : vector<1x1xf32>
        %78 = arith.subf %70, %77 : vector<1x1xf32>
        %79 = vector.broadcast %57 : f32 to vector<1x1xf32>
        %80 = arith.addf %78, %79 : vector<1x1xf32>
        %81 = arith.addf %62, %80 : vector<1x1xf32>
        %c0_47 = arith.constant 0 : index
        %c0_48 = arith.constant 0 : index
        %82 = vector.load %arg11[%c0_47, %c0_48] : memref<1x1xf32, #tpu.memory_space<vmem>>, vector<1x1xf32>
        tpu.vector_store %arg11[%c0_47, %c0_48], %81 {strides = array<i32>} : memref<1x1xf32, #tpu.memory_space<vmem>>, vector<1x1xf32>,
      } else {
      }
    } else {
    }
    %c0_i32_13 = arith.constant 0 : i32
    %17 = arith.cmpi eq, %arg1, %c0_i32_13 : i32
    %c0_i32_14 = arith.constant 0 : i32
    %18 = arith.cmpi eq, %arg2, %c0_i32_14 : i32
    %19 = arith.andi %17, %18 : i1
    %20 = arith.extui %19 : i1 to i32
    %c0_i32_15 = arith.constant 0 : i32
    %21 = arith.cmpi ne, %20, %c0_i32_15 : i32
    scf.if %21 {
      %c0_16 = arith.constant 0 : index
      %c0_17 = arith.constant 0 : index
      %22 = vector.load %arg11[%c0_16, %c0_17] : memref<1x1xf32, #tpu.memory_space<vmem>>, vector<1x1xf32>
      %23 = vector.shape_cast %22 : vector<1x1xf32> to vector<1x1x1xf32>
      %24 = vector.shape_cast %23 : vector<1x1x1xf32> to vector<1x1x1xf32>
      %25 = vector.broadcast %24 : vector<1x1x1xf32> to vector<1x8x128xf32>
      %c0_18 = arith.constant 0 : index
      %c0_19 = arith.constant 0 : index
      %c0_20 = arith.constant 0 : index
      %26 = vector.load %arg9[%c0_18, %c0_19, %c0_20] : memref<1x8x128xf32, #tpu.memory_space<vmem>>, vector<1x8x128xf32>
      tpu.vector_store %arg9[%c0_18, %c0_19, %c0_20], %25 {strides = array<i32>} : memref<1x8x128xf32, #tpu.memory_space<vmem>>, vector<1x8x128xf32>,
    } else {
    }
    return
  }
  func.func @transform_0(%arg0: i32, %arg1: i32, %arg2: i32) -> (i32, i32) {
    %c0_i32 = arith.constant 0 : i32
    return %arg2, %arg0 : i32, i32
  }
  func.func @transform_1(%arg0: i32, %arg1: i32, %arg2: i32) -> (i32, i32) {
    %c0_i32 = arith.constant 0 : i32
    return %arg2, %arg1 : i32, i32
  }
  func.func @transform_2(%arg0: i32, %arg1: i32, %arg2: i32) -> (i32, i32) {
    %c0_i32 = arith.constant 0 : i32
    %c0_i32_0 = arith.constant 0 : i32
    return %c0_i32, %arg0 : i32, i32
  }
  func.func @transform_3(%arg0: i32, %arg1: i32, %arg2: i32) -> (i32, i32) {
    %c0_i32 = arith.constant 0 : i32
    %c0_i32_0 = arith.constant 0 : i32
    return %c0_i32, %arg0 : i32, i32
  }
  func.func @transform_4(%arg0: i32, %arg1: i32, %arg2: i32) -> (i32, i32) {
    %c0_i32 = arith.constant 0 : i32
    %c0_i32_0 = arith.constant 0 : i32
    return %c0_i32, %arg1 : i32, i32
  }
  func.func @transform_5(%arg0: i32, %arg1: i32, %arg2: i32) -> (i32, i32) {
    %c0_i32 = arith.constant 0 : i32
    %c0_i32_0 = arith.constant 0 : i32
    return %c0_i32, %arg1 : i32, i32
  }
  func.func @transform_6(%arg0: i32, %arg1: i32, %arg2: i32) -> (i32, i32, i32) {
    %c0_i32 = arith.constant 0 : i32
    %c0_i32_0 = arith.constant 0 : i32
    %c0_i32_1 = arith.constant 0 : i32
    return %arg0, %c0_i32, %c0_i32_0 : i32, i32, i32
  }
}

</mosaic_0001>

<llo_original>
// kernel: tpu_custom_call.1
$region0: #{tpu_custom_call.1}
  #allocation0 [shape = 'u32[]', space=smem, size = 0x4, offset = 0x4, fixed_abs, tag = 'smem constant byte address 0x4 - core index']
  #allocation1 [shape = 'u32[72,128]{1,0:T(1,128)}', space=vmem, size = 0x9000, scoped, tag = 'internal scratch']
  #allocation2 [shape = 'f32[128,128]{1,0:T(8,128)}', space=vmem, size = 0x10000, scoped, tag = 'scratch operand']
  #allocation3 [shape = 'f32[1,1]{1,0:T(1,128)}', space=vmem, size = 0x200, scoped, tag = 'scratch operand']
  %s0 = inlined_call_operand.hbm [shape: f32[8,128], index: 0, kind: input, shape index: {}]
  %s1 = inlined_call_operand.hbm [shape: f32[8,128], index: 1, kind: input, shape index: {}]
  %s2 = inlined_call_operand.vmem [shape: f32[1,128], index: 2, kind: input, shape index: {}]
  %s3 = inlined_call_operand.vmem [shape: f32[1,128], index: 3, kind: input, shape index: {}]
  %s4 = inlined_call_operand.vmem [shape: f32[1,128], index: 4, kind: input, shape index: {}]
  %s5 = inlined_call_operand.vmem [shape: f32[1,128], index: 5, kind: input, shape index: {}]
  %s6 = inlined_call_operand.hbm [shape: f32[1,8,128], index: 6, kind: output, shape index: {}]
  %s7 = sld [smem:[#allocation0]]
  $region62: #{tpu_custom_call.1} parent=0
    _
  %s9 = ssub.s32 1, %s7
  %s10 = scalar_select 0, %s9, %s7
  $region1: #{tpu_custom_call.1} parent=0
    #allocation4 [shape = 'u8[4096]{0}', space=vmem, size = 0x1000, scoped, tag = 'input window, operand 0, single buffered']
    #allocation5 [shape = 's32[1]{0}', space=sflag, size = 0x4, scoped, tag = 'scoped memory for tpu_custom_call.1']
    #allocation6 [shape = 's32[1]{0}', space=sflag, size = 0x4, scoped, tag = 'scoped memory for tpu_custom_call.1']
    #allocation7 [shape = 'u8[4096]{0}', space=vmem, size = 0x1000, scoped, tag = 'input window, operand 1, single buffered']
    #allocation8 [shape = 's32[1]{0}', space=sflag, size = 0x4, scoped, tag = 'scoped memory for tpu_custom_call.1']
    #allocation9 [shape = 'u8[4096]{0}', space=vmem, size = 0x1000, scoped, tag = 'output window, operand 0, single buffered']
    %11 = vsyncpa [#allocation5], 0
    %12 = vsyncpa [#allocation8], 0
    %13 = vsyncpa [#allocation6], 0
    // Predicated region
    $region2: #{tpu_custom_call.1} parent=1 // pred_check
      _
    $region3: #{tpu_custom_call.1} parent=1 // pred_check_branch
      %15 = sbr.rel (0) target = $region5
    $region4: #{tpu_custom_call.1} parent=1 // pred_region
      %17 = vsyncadd [#allocation5], 0
      %s19 = sshll.u32 %s0, 4
      %s20 = int_to_ptr.hbm [resolvable:$true] %s19
      %s21 = sshll.u32 [#allocation4], 4
      %s22 = int_to_ptr.vmem [resolvable:$true] %s21
      %24 = dma.hbm_to_vmem [thread:$0]  %s20, 128, %s22, [#allocation5]
    $region5: #{tpu_custom_call.1} parent=1 // pred_fallthru
      _
    // Predicated region
    $region6: #{tpu_custom_call.1} parent=1 // pred_check
      _
    $region7: #{tpu_custom_call.1} parent=1 // pred_check_branch
      %26 = sbr.rel (0) target = $region9
    $region8: #{tpu_custom_call.1} parent=1 // pred_region
      %28 = vsyncadd [#allocation8], 0
      %s30 = sshll.u32 %s1, 4
      %s31 = int_to_ptr.hbm [resolvable:$true] %s30
      %s32 = sshll.u32 [#allocation7], 4
      %s33 = int_to_ptr.vmem [resolvable:$true] %s32
      %35 = dma.hbm_to_vmem [thread:$0]  %s31, 128, %s33, [#allocation8]
    $region9: #{tpu_custom_call.1} parent=1 // pred_fallthru
      _
    // Predicated region
    $region10: #{tpu_custom_call.1} parent=1 // pred_check
      _
    $region11: #{tpu_custom_call.1} parent=1 // pred_check_branch
      %37 = sbr.rel (0) target = $region13
    $region12: #{tpu_custom_call.1} parent=1 // pred_region
      _
    $region13: #{tpu_custom_call.1} parent=1 // pred_fallthru
      _
    // Predicated region
    $region14: #{tpu_custom_call.1} parent=1 // pred_check
      _
    $region15: #{tpu_custom_call.1} parent=1 // pred_check_branch
      %39 = sbr.rel (0) target = $region17
    $region16: #{tpu_custom_call.1} parent=1 // pred_region
      _
    $region17: #{tpu_custom_call.1} parent=1 // pred_fallthru
      _
    // Predicated region
    $region18: #{tpu_custom_call.1} parent=1 // pred_check
      _
    $region19: #{tpu_custom_call.1} parent=1 // pred_check_branch
      %41 = sbr.rel (0) target = $region21
    $region20: #{tpu_custom_call.1} parent=1 // pred_region
      _
    $region21: #{tpu_custom_call.1} parent=1 // pred_fallthru
      _
    // Predicated region
    $region22: #{tpu_custom_call.1} parent=1 // pred_check
      _
    $region23: #{tpu_custom_call.1} parent=1 // pred_check_branch
      %43 = sbr.rel (0) target = $region25
    $region24: #{tpu_custom_call.1} parent=1 // pred_region
      _
    $region25: #{tpu_custom_call.1} parent=1 // pred_fallthru
      _
    // Predicated region
    $region26: #{tpu_custom_call.1} parent=1 // pred_check
      _
    $region27: #{tpu_custom_call.1} parent=1 // pred_check_branch
      %45 = sbr.rel (0) target = $region29
    $region28: #{tpu_custom_call.1} parent=1 // pred_region
      %47 = dma.done [#allocation5], 128
    $region29: #{tpu_custom_call.1} parent=1 // pred_fallthru
      _
    // Predicated region
    $region30: #{tpu_custom_call.1} parent=1 // pred_check
      _
    $region31: #{tpu_custom_call.1} parent=1 // pred_check_branch
      %49 = sbr.rel (0) target = $region33
    $region32: #{tpu_custom_call.1} parent=1 // pred_region
      %51 = dma.done [#allocation8], 128
    $region33: #{tpu_custom_call.1} parent=1 // pred_fallthru
      _
    %p52 = scmp.eq.s32.totalorder 0, 0
    %p53 = scmp.eq.s32.totalorder 0, 0
    %p54 = pnand %p52, %p53
    %p55 = pneg %p54
    // Predicated region
    $region34: #{tpu_custom_call.1} parent=1 // pred_check
      _
    $region35: #{tpu_custom_call.1} parent=1 // pred_check_branch
      %57 = sbr.rel (%p54) target = $region37
    $region36: #{tpu_custom_call.1} parent=1 // pred_region
      %vm58 = vcmask 0
      %59 = vst.msk [vmem:[#allocation3] sm:$0x1] %vm58, 0.0
    $region37: #{tpu_custom_call.1} parent=1 // pred_fallthru
      _
    // Predicated region
    $region38: #{tpu_custom_call.1} parent=1 // pred_check
      %p60 = pneg %p53
    $region39: #{tpu_custom_call.1} parent=1 // pred_check_branch
      %62 = sbr.rel (%p60) target = $region41
    $region40: #{tpu_custom_call.1} parent=1 // pred_region
      %63 = vst [vmem:[#allocation2] sm:$0xff] 0.0
      %64 = vst [vmem:[#allocation2 + $0x8] sm:$0xff] 0.0
      %65 = vst [vmem:[#allocation2 + $0x10] sm:$0xff] 0.0
      %66 = vst [vmem:[#allocation2 + $0x18] sm:$0xff] 0.0
      %67 = vst [vmem:[#allocation2 + $0x20] sm:$0xff] 0.0
      %68 = vst [vmem:[#allocation2 + $0x28] sm:$0xff] 0.0
      %69 = vst [vmem:[#allocation2 + $0x30] sm:$0xff] 0.0
      %70 = vst [vmem:[#allocation2 + $0x38] sm:$0xff] 0.0
      %71 = vst [vmem:[#allocation2 + $0x40] sm:$0xff] 0.0
      %72 = vst [vmem:[#allocation2 + $0x48] sm:$0xff] 0.0
      %73 = vst [vmem:[#allocation2 + $0x50] sm:$0xff] 0.0
      %74 = vst [vmem:[#allocation2 + $0x58] sm:$0xff] 0.0
      %75 = vst [vmem:[#allocation2 + $0x60] sm:$0xff] 0.0
      %76 = vst [vmem:[#allocation2 + $0x68] sm:$0xff] 0.0
      %77 = vst [vmem:[#allocation2 + $0x70] sm:$0xff] 0.0
      %78 = vst [vmem:[#allocation2 + $0x78] sm:$0xff] 0.0
    $region41: #{tpu_custom_call.1} parent=1 // pred_fallthru
      _
    %v79 = vld [vmem:[#allocation2] sm:$0xff]
    %v80 = vld [vmem:[#allocation2 + $0x8] sm:$0xff]
    %v81 = vld [vmem:[#allocation2 + $0x10] sm:$0xff]
    %v82 = vld [vmem:[#allocation2 + $0x18] sm:$0xff]
    %v83 = vld [vmem:[#allocation2 + $0x20] sm:$0xff]
    %v84 = vld [vmem:[#allocation2 + $0x28] sm:$0xff]
    %v85 = vld [vmem:[#allocation2 + $0x30] sm:$0xff]
    %v86 = vld [vmem:[#allocation2 + $0x38] sm:$0xff]
    %v87 = vld [vmem:[#allocation2 + $0x40] sm:$0xff]
    %v88 = vld [vmem:[#allocation2 + $0x48] sm:$0xff]
    %v89 = vld [vmem:[#allocation2 + $0x50] sm:$0xff]
    %v90 = vld [vmem:[#allocation2 + $0x58] sm:$0xff]
    %v91 = vld [vmem:[#allocation2 + $0x60] sm:$0xff]
    %v92 = vld [vmem:[#allocation2 + $0x68] sm:$0xff]
    %v93 = vld [vmem:[#allocation2 + $0x70] sm:$0xff]
    %v94 = vld [vmem:[#allocation2 + $0x78] sm:$0xff]
    %v95 = vld [vmem:[#allocation4] sm:$0xff]
    %v96 = vld [vmem:[#allocation7] sm:$0xff]
    %97 = vxpose.xlu0.b32.start [1/16] %v95, 128
    %98 = vxpose.xlu0.b32.cont [2/16] 0.0, 128
    %99 = vxpose.xlu0.b32.cont [3/16] 0.0, 128
    %100 = vxpose.xlu0.b32.cont [4/16] 0.0, 128
    %101 = vxpose.xlu0.b32.cont [5/16] 0.0, 128
    %102 = vxpose.xlu0.b32.cont [6/16] 0.0, 128
    %103 = vxpose.xlu0.b32.cont [7/16] 0.0, 128
    %104 = vxpose.xlu0.b32.cont [8/16] 0.0, 128
    %105 = vxpose.xlu0.b32.cont [9/16] 0.0, 128
    %106 = vxpose.xlu0.b32.cont [10/16] 0.0, 128
    %107 = vxpose.xlu0.b32.cont [11/16] 0.0, 128
    %108 = vxpose.xlu0.b32.cont [12/16] 0.0, 128
    %109 = vxpose.xlu0.b32.cont [13/16] 0.0, 128
    %110 = vxpose.xlu0.b32.cont [14/16] 0.0, 128
    %111 = vxpose.xlu0.b32.cont [15/16] 0.0, 128
    %112 = vxpose.xlu0.b32.end [16/16] 0.0, 128
    %v113 = vpop.trf.xlu0
    %v114 = vpop.trf.xlu0
    %v115 = vpop.trf.xlu0
    %v116 = vpop.trf.xlu0
    %v117 = vpop.trf.xlu0
    %v118 = vpop.trf.xlu0
    %v119 = vpop.trf.xlu0
    %v120 = vpop.trf.xlu0
    %v121 = vpop.trf.xlu0
    %v122 = vpop.trf.xlu0
    %v123 = vpop.trf.xlu0
    %v124 = vpop.trf.xlu0
    %v125 = vpop.trf.xlu0
    %v126 = vpop.trf.xlu0
    %v127 = vpop.trf.xlu0
    %v128 = vpop.trf.xlu0
    %vm129 = vcmask 64512
    %v131 = vsel %vm129, %v113, 0
    %v134 = vsel %vm129, %v114, 0
    %v137 = vsel %vm129, %v115, 0
    %v140 = vsel %vm129, %v116, 0
    %v143 = vsel %vm129, %v117, 0
    %v146 = vsel %vm129, %v118, 0
    %v149 = vsel %vm129, %v119, 0
    %v152 = vsel %vm129, %v120, 0
    %v155 = vsel %vm129, %v121, 0
    %v158 = vsel %vm129, %v122, 0
    %v161 = vsel %vm129, %v123, 0
    %v164 = vsel %vm129, %v124, 0
    %v167 = vsel %vm129, %v125, 0
    %v170 = vsel %vm129, %v126, 0
    %v173 = vsel %vm129, %v127, 0
    %v176 = vsel %vm129, %v128, 0
    %178 = vmatpush.msra.mxu0 0.0
    %179 = vmatpush.msra.mxu0 0.0
    %180 = vmatpush.msra.mxu0 0.0
    %181 = vmatpush.msra.mxu0 0.0
    %182 = vmatpush.msra.mxu0 0.0
    %183 = vmatpush.msra.mxu0 0.0
    %184 = vmatpush.msra.mxu0 0.0
    %185 = vmatpush.msra.mxu0 0.0
    %186 = vmatpush.msra.mxu0 0.0
    %187 = vmatpush.msra.mxu0 0.0
    %188 = vmatpush.msra.mxu0 0.0
    %189 = vmatpush.msra.mxu0 0.0
    %190 = vmatpush.msra.mxu0 0.0
    %191 = vmatpush.msra.mxu0 0.0
    %192 = vmatpush.msra.mxu0 0.0
    %193 = vmatpush.msra.mxu0 %v96
    %194 = vmatmul.f32.gmra.mxu0 %v131
    %v195 = vpop.f32.mrf.mxu0
    %v196 = vadd.f32 0.0, %v195
    %197 = vmatmul.f32.gmra.mxu0 %v134
    %v198 = vpop.f32.mrf.mxu0
    %v199 = vadd.f32 0.0, %v198
    %200 = vmatmul.f32.gmra.mxu0 %v137
    %v201 = vpop.f32.mrf.mxu0
    %v202 = vadd.f32 0.0, %v201
    %203 = vmatmul.f32.gmra.mxu0 %v140
    %v204 = vpop.f32.mrf.mxu0
    %v205 = vadd.f32 0.0, %v204
    %206 = vmatmul.f32.gmra.mxu0 %v143
    %v207 = vpop.f32.mrf.mxu0
    %v208 = vadd.f32 0.0, %v207
    %209 = vmatmul.f32.gmra.mxu0 %v146
    %v210 = vpop.f32.mrf.mxu0
    %v211 = vadd.f32 0.0, %v210
    %212 = vmatmul.f32.gmra.mxu0 %v149
    %v213 = vpop.f32.mrf.mxu0
    %v214 = vadd.f32 0.0, %v213
    %215 = vmatmul.f32.gmra.mxu0 %v152
    %v216 = vpop.f32.mrf.mxu0
    %v217 = vadd.f32 0.0, %v216
    %218 = vmatmul.f32.gmra.mxu0 %v155
    %v219 = vpop.f32.mrf.mxu0
    %v220 = vadd.f32 0.0, %v219
    %221 = vmatmul.f32.gmra.mxu0 %v158
    %v222 = vpop.f32.mrf.mxu0
    %v223 = vadd.f32 0.0, %v222
    %224 = vmatmul.f32.gmra.mxu0 %v161
    %v225 = vpop.f32.mrf.mxu0
    %v226 = vadd.f32 0.0, %v225
    %227 = vmatmul.f32.gmra.mxu0 %v164
    %v228 = vpop.f32.mrf.mxu0
    %v229 = vadd.f32 0.0, %v228
    %230 = vmatmul.f32.gmra.mxu0 %v167
    %v231 = vpop.f32.mrf.mxu0
    %v232 = vadd.f32 0.0, %v231
    %233 = vmatmul.f32.gmra.mxu0 %v170
    %v234 = vpop.f32.mrf.mxu0
    %v235 = vadd.f32 0.0, %v234
    %236 = vmatmul.f32.gmra.mxu0 %v173
    %v237 = vpop.f32.mrf.mxu0
    %v238 = vadd.f32 0.0, %v237
    %239 = vmatmul.f32.gmra.mxu0 %v176
    %v240 = vpop.f32.mrf.mxu0
    %v241 = vadd.f32 0.0, %v240
    %242 = vdwg.mxu0
    %v243 = vadd.f32 %v79, %v196
    %v244 = vadd.f32 %v80, %v199
    %v245 = vadd.f32 %v81, %v202
    %v246 = vadd.f32 %v82, %v205
    %v247 = vadd.f32 %v83, %v208
    %v248 = vadd.f32 %v84, %v211
    %v249 = vadd.f32 %v85, %v214
    %v250 = vadd.f32 %v86, %v217
    %v251 = vadd.f32 %v87, %v220
    %v252 = vadd.f32 %v88, %v223
    %v253 = vadd.f32 %v89, %v226
    %v254 = vadd.f32 %v90, %v229
    %v255 = vadd.f32 %v91, %v232
    %v256 = vadd.f32 %v92, %v235
    %v257 = vadd.f32 %v93, %v238
    %v258 = vadd.f32 %v94, %v241
    %259 = vst [vmem:[#allocation2] sm:$0xff] %v243
    %260 = vst [vmem:[#allocation2 + $0x8] sm:$0xff] %v244
    %261 = vst [vmem:[#allocation2 + $0x10] sm:$0xff] %v245
    %262 = vst [vmem:[#allocation2 + $0x18] sm:$0xff] %v246
    %263 = vst [vmem:[#allocation2 + $0x20] sm:$0xff] %v247
    %264 = vst [vmem:[#allocation2 + $0x28] sm:$0xff] %v248
    %265 = vst [vmem:[#allocation2 + $0x30] sm:$0xff] %v249
    %266 = vst [vmem:[#allocation2 + $0x38] sm:$0xff] %v250
    %267 = vst [vmem:[#allocation2 + $0x40] sm:$0xff] %v251
    %268 = vst [vmem:[#allocation2 + $0x48] sm:$0xff] %v252
    %269 = vst [vmem:[#allocation2 + $0x50] sm:$0xff] %v253
    %270 = vst [vmem:[#allocation2 + $0x58] sm:$0xff] %v254
    %271 = vst [vmem:[#allocation2 + $0x60] sm:$0xff] %v255
    %272 = vst [vmem:[#allocation2 + $0x68] sm:$0xff] %v256
    %273 = vst [vmem:[#allocation2 + $0x70] sm:$0xff] %v257
    %274 = vst [vmem:[#allocation2 + $0x78] sm:$0xff] %v258
    // Predicated region
    $region42: #{tpu_custom_call.1} parent=1 // pred_check
      %p275 = pneg %p53
    $region43: #{tpu_custom_call.1} parent=1 // pred_check_branch
      %277 = sbr.rel (%p275) target = $region45
    $region44: #{tpu_custom_call.1} parent=1 // pred_region
      %v278 = vld [vmem:[%s2] sm:$0x1]
      %v279 = vld [vmem:[%s4] sm:$0x1]
      %280 = vxpose.xlu0.b32.start [1/16] %v278, 128
      %281 = vxpose.xlu0.b32.cont [2/16] 0.0, 128
      %282 = vxpose.xlu0.b32.cont [3/16] 0.0, 128
      %283 = vxpose.xlu0.b32.cont [4/16] 0.0, 128
      %284 = vxpose.xlu0.b32.cont [5/16] 0.0, 128
      %285 = vxpose.xlu0.b32.cont [6/16] 0.0, 128
      %286 = vxpose.xlu0.b32.cont [7/16] 0.0, 128
      %287 = vxpose.xlu0.b32.cont [8/16] 0.0, 128
      %288 = vxpose.xlu0.b32.cont [9/16] 0.0, 128
      %289 = vxpose.xlu0.b32.cont [10/16] 0.0, 128
      %290 = vxpose.xlu0.b32.cont [11/16] 0.0, 128
      %291 = vxpose.xlu0.b32.cont [12/16] 0.0, 128
      %292 = vxpose.xlu0.b32.cont [13/16] 0.0, 128
      %293 = vxpose.xlu0.b32.cont [14/16] 0.0, 128
      %294 = vxpose.xlu0.b32.cont [15/16] 0.0, 128
      %295 = vxpose.xlu0.b32.end [16/16] 0.0, 128
      %v296 = vpop.trf.xlu0
      %v297 = vpop.trf.xlu0
      %v298 = vpop.trf.xlu0
      %v299 = vpop.trf.xlu0
      %v300 = vpop.trf.xlu0
      %v301 = vpop.trf.xlu0
      %v302 = vpop.trf.xlu0
      %v303 = vpop.trf.xlu0
      %v304 = vpop.trf.xlu0
      %v305 = vpop.trf.xlu0
      %v306 = vpop.trf.xlu0
      %v307 = vpop.trf.xlu0
      %v308 = vpop.trf.xlu0
      %v309 = vpop.trf.xlu0
      %v310 = vpop.trf.xlu0
      %v311 = vpop.trf.xlu0
      %vm312 = vcmask 7168
      %v314 = vsel %vm312, %v296, 0
      %v317 = vsel %vm312, %v297, 0
      %v320 = vsel %vm312, %v298, 0
      %v323 = vsel %vm312, %v299, 0
      %v326 = vsel %vm312, %v300, 0
      %v329 = vsel %vm312, %v301, 0
      %v332 = vsel %vm312, %v302, 0
      %v335 = vsel %vm312, %v303, 0
      %v338 = vsel %vm312, %v304, 0
      %v341 = vsel %vm312, %v305, 0
      %v344 = vsel %vm312, %v306, 0
      %v347 = vsel %vm312, %v307, 0
      %v350 = vsel %vm312, %v308, 0
      %v353 = vsel %vm312, %v309, 0
      %v356 = vsel %vm312, %v310, 0
      %v359 = vsel %vm312, %v311, 0
      %vm361 = vcmask 1040384
      %v363 = vsel %vm361, %v279, 0
      %365 = vmatpush.msra.mxu0 0.0
      %366 = vmatpush.msra.mxu0 0.0
      %367 = vmatpush.msra.mxu0 0.0
      %368 = vmatpush.msra.mxu0 0.0
      %369 = vmatpush.msra.mxu0 0.0
      %370 = vmatpush.msra.mxu0 0.0
      %371 = vmatpush.msra.mxu0 0.0
      %372 = vmatpush.msra.mxu0 0.0
      %373 = vmatpush.msra.mxu0 0.0
      %374 = vmatpush.msra.mxu0 0.0
      %375 = vmatpush.msra.mxu0 0.0
      %376 = vmatpush.msra.mxu0 0.0
      %377 = vmatpush.msra.mxu0 0.0
      %378 = vmatpush.msra.mxu0 0.0
      %379 = vmatpush.msra.mxu0 0.0
      %380 = vmatpush.msra.mxu0 %v363
      %381 = vmatmul.f32.gmra.mxu0 %v314
      %v382 = vpop.f32.mrf.mxu0
      %v383 = vadd.f32 0.0, %v382
      %384 = vmatmul.f32.gmra.mxu0 %v317
      %v385 = vpop.f32.mrf.mxu0
      %v386 = vadd.f32 0.0, %v385
      %387 = vmatmul.f32.gmra.mxu0 %v320
      %v388 = vpop.f32.mrf.mxu0
      %v389 = vadd.f32 0.0, %v388
      %390 = vmatmul.f32.gmra.mxu0 %v323
      %v391 = vpop.f32.mrf.mxu0
      %v392 = vadd.f32 0.0, %v391
      %393 = vmatmul.f32.gmra.mxu0 %v326
      %v394 = vpop.f32.mrf.mxu0
      %v395 = vadd.f32 0.0, %v394
      %396 = vmatmul.f32.gmra.mxu0 %v329
      %v397 = vpop.f32.mrf.mxu0
      %v398 = vadd.f32 0.0, %v397
      %399 = vmatmul.f32.gmra.mxu0 %v332
      %v400 = vpop.f32.mrf.mxu0
      %v401 = vadd.f32 0.0, %v400
      %402 = vmatmul.f32.gmra.mxu0 %v335
      %v403 = vpop.f32.mrf.mxu0
      %v404 = vadd.f32 0.0, %v403
      %405 = vmatmul.f32.gmra.mxu0 %v338
      %v406 = vpop.f32.mrf.mxu0
      %v407 = vadd.f32 0.0, %v406
      %408 = vmatmul.f32.gmra.mxu0 %v341
      %v409 = vpop.f32.mrf.mxu0
      %v410 = vadd.f32 0.0, %v409
      %411 = vmatmul.f32.gmra.mxu0 %v344
      %v412 = vpop.f32.mrf.mxu0
      %v413 = vadd.f32 0.0, %v412
      %414 = vmatmul.f32.gmra.mxu0 %v347
      %v415 = vpop.f32.mrf.mxu0
      %v416 = vadd.f32 0.0, %v415
      %417 = vmatmul.f32.gmra.mxu0 %v350
      %v418 = vpop.f32.mrf.mxu0
      %v419 = vadd.f32 0.0, %v418
      %420 = vmatmul.f32.gmra.mxu0 %v353
      %v421 = vpop.f32.mrf.mxu0
      %v422 = vadd.f32 0.0, %v421
      %423 = vmatmul.f32.gmra.mxu0 %v356
      %v424 = vpop.f32.mrf.mxu0
      %v425 = vadd.f32 0.0, %v424
      %426 = vmatmul.f32.gmra.mxu0 %v359
      %v427 = vpop.f32.mrf.mxu0
      %v428 = vadd.f32 0.0, %v427
      %429 = vdwg.mxu0
      %v430 = vld [vmem:[%s3] sm:$0x1]
      %v431 = vld [vmem:[%s5] sm:$0x1]
      %432 = vxpose.xlu0.b32.start [1/16] %v430, 128
      %433 = vxpose.xlu0.b32.cont [2/16] 0.0, 128
      %434 = vxpose.xlu0.b32.cont [3/16] 0.0, 128
      %435 = vxpose.xlu0.b32.cont [4/16] 0.0, 128
      %436 = vxpose.xlu0.b32.cont [5/16] 0.0, 128
      %437 = vxpose.xlu0.b32.cont [6/16] 0.0, 128
      %438 = vxpose.xlu0.b32.cont [7/16] 0.0, 128
      %439 = vxpose.xlu0.b32.cont [8/16] 0.0, 128
      %440 = vxpose.xlu0.b32.cont [9/16] 0.0, 128
      %441 = vxpose.xlu0.b32.cont [10/16] 0.0, 128
      %442 = vxpose.xlu0.b32.cont [11/16] 0.0, 128
      %443 = vxpose.xlu0.b32.cont [12/16] 0.0, 128
      %444 = vxpose.xlu0.b32.cont [13/16] 0.0, 128
      %445 = vxpose.xlu0.b32.cont [14/16] 0.0, 128
      %446 = vxpose.xlu0.b32.cont [15/16] 0.0, 128
      %447 = vxpose.xlu0.b32.end [16/16] 0.0, 128
      %v448 = vpop.trf.xlu0
      %v449 = vpop.trf.xlu0
      %v450 = vpop.trf.xlu0
      %v451 = vpop.trf.xlu0
      %v452 = vpop.trf.xlu0
      %v453 = vpop.trf.xlu0
      %v454 = vpop.trf.xlu0
      %v455 = vpop.trf.xlu0
      %v456 = vpop.trf.xlu0
      %v457 = vpop.trf.xlu0
      %v458 = vpop.trf.xlu0
      %v459 = vpop.trf.xlu0
      %v460 = vpop.trf.xlu0
      %v461 = vpop.trf.xlu0
      %v462 = vpop.trf.xlu0
      %v463 = vpop.trf.xlu0
      %v465 = vsel %vm312, %v448, 0
      %v468 = vsel %vm312, %v449, 0
      %v471 = vsel %vm312, %v450, 0
      %v474 = vsel %vm312, %v451, 0
      %v477 = vsel %vm312, %v452, 0
      %v480 = vsel %vm312, %v453, 0
      %v483 = vsel %vm312, %v454, 0
      %v486 = vsel %vm312, %v455, 0
      %v489 = vsel %vm312, %v456, 0
      %v492 = vsel %vm312, %v457, 0
      %v495 = vsel %vm312, %v458, 0
      %v498 = vsel %vm312, %v459, 0
      %v501 = vsel %vm312, %v460, 0
      %v504 = vsel %vm312, %v461, 0
      %v507 = vsel %vm312, %v462, 0
      %v510 = vsel %vm312, %v463, 0
      %v513 = vsel %vm361, %v431, 0
      %515 = vmatpush.msra.mxu0 0.0
      %516 = vmatpush.msra.mxu0 0.0
      %517 = vmatpush.msra.mxu0 0.0
      %518 = vmatpush.msra.mxu0 0.0
      %519 = vmatpush.msra.mxu0 0.0
      %520 = vmatpush.msra.mxu0 0.0
      %521 = vmatpush.msra.mxu0 0.0
      %522 = vmatpush.msra.mxu0 0.0
      %523 = vmatpush.msra.mxu0 0.0
      %524 = vmatpush.msra.mxu0 0.0
      %525 = vmatpush.msra.mxu0 0.0
      %526 = vmatpush.msra.mxu0 0.0
      %527 = vmatpush.msra.mxu0 0.0
      %528 = vmatpush.msra.mxu0 0.0
      %529 = vmatpush.msra.mxu0 0.0
      %530 = vmatpush.msra.mxu0 %v513
      %531 = vmatmul.f32.gmra.mxu0 %v465
      %v532 = vpop.f32.mrf.mxu0
      %v533 = vadd.f32 0.0, %v532
      %534 = vmatmul.f32.gmra.mxu0 %v468
      %v535 = vpop.f32.mrf.mxu0
      %v536 = vadd.f32 0.0, %v535
      %537 = vmatmul.f32.gmra.mxu0 %v471
      %v538 = vpop.f32.mrf.mxu0
      %v539 = vadd.f32 0.0, %v538
      %540 = vmatmul.f32.gmra.mxu0 %v474
      %v541 = vpop.f32.mrf.mxu0
      %v542 = vadd.f32 0.0, %v541
      %543 = vmatmul.f32.gmra.mxu0 %v477
      %v544 = vpop.f32.mrf.mxu0
      %v545 = vadd.f32 0.0, %v544
      %546 = vmatmul.f32.gmra.mxu0 %v480
      %v547 = vpop.f32.mrf.mxu0
      %v548 = vadd.f32 0.0, %v547
      %549 = vmatmul.f32.gmra.mxu0 %v483
      %v550 = vpop.f32.mrf.mxu0
      %v551 = vadd.f32 0.0, %v550
      %552 = vmatmul.f32.gmra.mxu0 %v486
      %v553 = vpop.f32.mrf.mxu0
      %v554 = vadd.f32 0.0, %v553
      %555 = vmatmul.f32.gmra.mxu0 %v489
      %v556 = vpop.f32.mrf.mxu0
      %v557 = vadd.f32 0.0, %v556
      %558 = vmatmul.f32.gmra.mxu0 %v492
      %v559 = vpop.f32.mrf.mxu0
      %v560 = vadd.f32 0.0, %v559
      %561 = vmatmul.f32.gmra.mxu0 %v495
      %v562 = vpop.f32.mrf.mxu0
      %v563 = vadd.f32 0.0, %v562
      %564 = vmatmul.f32.gmra.mxu0 %v498
      %v565 = vpop.f32.mrf.mxu0
      %v566 = vadd.f32 0.0, %v565
      %567 = vmatmul.f32.gmra.mxu0 %v501
      %v568 = vpop.f32.mrf.mxu0
      %v569 = vadd.f32 0.0, %v568
      %570 = vmatmul.f32.gmra.mxu0 %v504
      %v571 = vpop.f32.mrf.mxu0
      %v572 = vadd.f32 0.0, %v571
      %573 = vmatmul.f32.gmra.mxu0 %v507
      %v574 = vpop.f32.mrf.mxu0
      %v575 = vadd.f32 0.0, %v574
      %576 = vmatmul.f32.gmra.mxu0 %v510
      %v577 = vpop.f32.mrf.mxu0
      %v578 = vadd.f32 0.0, %v577
      %579 = vdwg.mxu0
      %v580 = vld [vmem:[#allocation2] sm:$0xff]
      %v581 = vld [vmem:[#allocation2 + $0x8] sm:$0xff]
      %v582 = vld [vmem:[#allocation2 + $0x10] sm:$0xff]
      %v583 = vld [vmem:[#allocation2 + $0x18] sm:$0xff]
      %v584 = vld [vmem:[#allocation2 + $0x20] sm:$0xff]
      %v585 = vld [vmem:[#allocation2 + $0x28] sm:$0xff]
      %v586 = vld [vmem:[#allocation2 + $0x30] sm:$0xff]
      %v587 = vld [vmem:[#allocation2 + $0x38] sm:$0xff]
      %v588 = vld [vmem:[#allocation2 + $0x40] sm:$0xff]
      %v589 = vld [vmem:[#allocation2 + $0x48] sm:$0xff]
      %v590 = vld [vmem:[#allocation2 + $0x50] sm:$0xff]
      %v591 = vld [vmem:[#allocation2 + $0x58] sm:$0xff]
      %v592 = vld [vmem:[#allocation2 + $0x60] sm:$0xff]
      %v593 = vld [vmem:[#allocation2 + $0x68] sm:$0xff]
      %v594 = vld [vmem:[#allocation2 + $0x70] sm:$0xff]
      %v595 = vld [vmem:[#allocation2 + $0x78] sm:$0xff]
      %v596 = vmul.f32 %v580, %v383
      %v597 = vmul.f32 %v581, %v386
      %v598 = vmul.f32 %v582, %v389
      %v599 = vmul.f32 %v583, %v392
      %v600 = vmul.f32 %v584, %v395
      %v601 = vmul.f32 %v585, %v398
      %v602 = vmul.f32 %v586, %v401
      %v603 = vmul.f32 %v587, %v404
      %v604 = vmul.f32 %v588, %v407
      %v605 = vmul.f32 %v589, %v410
      %v606 = vmul.f32 %v590, %v413
      %v607 = vmul.f32 %v591, %v416
      %v608 = vmul.f32 %v592, %v419
      %v609 = vmul.f32 %v593, %v422
      %v610 = vmul.f32 %v594, %v425
      %v611 = vmul.f32 %v595, %v428
      %v612 = vsub.f32 %v596, %v533
      %v613 = vsub.f32 %v597, %v536
      %v614 = vsub.f32 %v598, %v539
      %v615 = vsub.f32 %v599, %v542
      %v616 = vsub.f32 %v600, %v545
      %v617 = vsub.f32 %v601, %v548
      %v618 = vsub.f32 %v602, %v551
      %v619 = vsub.f32 %v603, %v554
      %v620 = vsub.f32 %v604, %v557
      %v621 = vsub.f32 %v605, %v560
      %v622 = vsub.f32 %v606, %v563
      %v623 = vsub.f32 %v607, %v566
      %v624 = vsub.f32 %v608, %v569
      %v625 = vsub.f32 %v609, %v572
      %v626 = vsub.f32 %v610, %v575
      %v627 = vsub.f32 %v611, %v578
      %v628 = vmul.f32 %v612, %v612
      %v629 = vmul.f32 %v613, %v613
      %v630 = vmul.f32 %v614, %v614
      %v631 = vmul.f32 %v615, %v615
      %v632 = vmul.f32 %v616, %v616
      %v633 = vmul.f32 %v617, %v617
      %v634 = vmul.f32 %v618, %v618
      %v635 = vmul.f32 %v619, %v619
      %v636 = vmul.f32 %v620, %v620
      %v637 = vmul.f32 %v621, %v621
      %v638 = vmul.f32 %v622, %v622
      %v639 = vmul.f32 %v623, %v623
      %v640 = vmul.f32 %v624, %v624
      %v641 = vmul.f32 %v625, %v625
      %v642 = vmul.f32 %v626, %v626
      %v643 = vmul.f32 %v627, %v627
      %v644 = vld [vmem:[#allocation3] sm:$0x1]
      %v645 = vadd.f32 %v628, %v629
      %v646 = vadd.f32 %v645, %v630
      %v647 = vadd.f32 %v646, %v631
      %v648 = vadd.f32 %v647, %v632
      %v649 = vadd.f32 %v648, %v633
      %v650 = vadd.f32 %v649, %v634
      %v651 = vadd.f32 %v650, %v635
      %v652 = vadd.f32 %v651, %v636
      %v653 = vadd.f32 %v652, %v637
      %v654 = vadd.f32 %v653, %v638
      %v655 = vadd.f32 %v654, %v639
      %v656 = vadd.f32 %v655, %v640
      %v657 = vadd.f32 %v656, %v641
      %v658 = vadd.f32 %v657, %v642
      %v659 = vadd.f32 %v658, %v643
      %660 = vadd.xlane.f32.xlu0 %v659
      %v661 = vpop.xlane.xlu0 %660
      %v662 = vrot.slane %v661, 4
      %v663 = vadd.f32 %v661, %v662
      %v664 = vrot.slane %v663, 2
      %v665 = vadd.f32 %v663, %v664
      %v666 = vrot.slane %v665, 1
      %v667 = vadd.f32 %v665, %v666
      %s668 = vtos %v667
      %v669 = vstv %s668
      %v670 = vmul.f32 %v669, 0.005
      %v671 = vadd.f32 %v644, %v670
      %vm672 = vcmask 0
      %673 = vst.msk [vmem:[#allocation3] sm:$0x1] %vm672, %v671
      %p674 = scmp.eq.s32.totalorder 0, 0
      // Predicated region
      $region46: #{tpu_custom_call.1} parent=44 // pred_check
        %p675 = pneg %p674
      $region47: #{tpu_custom_call.1} parent=44 // pred_check_branch
        %677 = sbr.rel (%p675) target = $region49
      $region48: #{tpu_custom_call.1} parent=44 // pred_region
        %v678 = vlaneseq
        %v679 = vshrl.u32 %v678, 7
        %v680 = vadd.s32 %v679, 8
        %v681 = vadd.s32 %v679, 16
        %v682 = vadd.s32 %v679, 24
        %v683 = vadd.s32 %v679, 32
        %v684 = vadd.s32 %v679, 40
        %v685 = vadd.s32 %v679, 48
        %v686 = vadd.s32 %v679, 56
        %v687 = vadd.s32 %v679, 64
        %v688 = vadd.s32 %v679, 72
        %v689 = vadd.s32 %v679, 80
        %v690 = vadd.s32 %v679, 88
        %v691 = vadd.s32 %v679, 96
        %v692 = vadd.s32 %v679, 104
        %v693 = vadd.s32 %v679, 112
        %v694 = vadd.s32 %v679, 120
        %v695 = vlaneseq
        %v696 = vand.u32 %v695, 127
        %vm697 = vcmp.eq.s32.totalorder %v679, %v696
        %vm698 = vcmp.eq.s32.totalorder %v680, %v696
        %vm699 = vcmp.eq.s32.totalorder %v681, %v696
        %vm700 = vcmp.eq.s32.totalorder %v682, %v696
        %vm701 = vcmp.eq.s32.totalorder %v683, %v696
        %vm702 = vcmp.eq.s32.totalorder %v684, %v696
        %vm703 = vcmp.eq.s32.totalorder %v685, %v696
        %vm704 = vcmp.eq.s32.totalorder %v686, %v696
        %vm705 = vcmp.eq.s32.totalorder %v687, %v696
        %vm706 = vcmp.eq.s32.totalorder %v688, %v696
        %vm707 = vcmp.eq.s32.totalorder %v689, %v696
        %vm708 = vcmp.eq.s32.totalorder %v690, %v696
        %vm709 = vcmp.eq.s32.totalorder %v691, %v696
        %vm710 = vcmp.eq.s32.totalorder %v692, %v696
        %vm711 = vcmp.eq.s32.totalorder %v693, %v696
        %vm712 = vcmp.eq.s32.totalorder %v694, %v696
        %s713 = smul.u32 0, 128
        %v714 = vstv %s713
        %v715 = vadd.s32 %v714, %v679
        %v716 = vadd.s32 %v714, %v680
        %v717 = vadd.s32 %v714, %v681
        %v718 = vadd.s32 %v714, %v682
        %v719 = vadd.s32 %v714, %v683
        %v720 = vadd.s32 %v714, %v684
        %v721 = vadd.s32 %v714, %v685
        %v722 = vadd.s32 %v714, %v686
        %v723 = vadd.s32 %v714, %v687
        %v724 = vadd.s32 %v714, %v688
        %v725 = vadd.s32 %v714, %v689
        %v726 = vadd.s32 %v714, %v690
        %v727 = vadd.s32 %v714, %v691
        %v728 = vadd.s32 %v714, %v692
        %v729 = vadd.s32 %v714, %v693
        %v730 = vadd.s32 %v714, %v694
        %vm731 = vcmp.lt.s32.totalorder %v715, 32
        %vm732 = vcmp.lt.s32.totalorder %v716, 32
        %vm733 = vcmp.lt.s32.totalorder %v717, 32
        %vm734 = vcmp.lt.s32.totalorder %v718, 32
        %vm735 = vcmp.lt.s32.totalorder %v719, 32
        %vm736 = vcmp.lt.s32.totalorder %v720, 32
        %vm737 = vcmp.lt.s32.totalorder %v721, 32
        %vm738 = vcmp.lt.s32.totalorder %v722, 32
        %vm739 = vcmp.lt.s32.totalorder %v723, 32
        %vm740 = vcmp.lt.s32.totalorder %v724, 32
        %vm741 = vcmp.lt.s32.totalorder %v725, 32
        %vm742 = vcmp.lt.s32.totalorder %v726, 32
        %vm743 = vcmp.lt.s32.totalorder %v727, 32
        %vm744 = vcmp.lt.s32.totalorder %v728, 32
        %vm745 = vcmp.lt.s32.totalorder %v729, 32
        %vm746 = vcmp.lt.s32.totalorder %v730, 32
        %vm747 = vmand %vm697, %vm731
        %vm748 = vmand %vm698, %vm732
        %vm749 = vmand %vm699, %vm733
        %vm750 = vmand %vm700, %vm734
        %vm751 = vmand %vm701, %vm735
        %vm752 = vmand %vm702, %vm736
        %vm753 = vmand %vm703, %vm737
        %vm754 = vmand %vm704, %vm738
        %vm755 = vmand %vm705, %vm739
        %vm756 = vmand %vm706, %vm740
        %vm757 = vmand %vm707, %vm741
        %vm758 = vmand %vm708, %vm742
        %vm759 = vmand %vm709, %vm743
        %vm760 = vmand %vm710, %vm744
        %vm761 = vmand %vm711, %vm745
        %vm762 = vmand %vm712, %vm746
        %s763 = ssub.s32 32, %s713
        %p764 = scmp.lt.s32.totalorder %s763, 128
        %s765 = scalar_select %p764, %s763, 128
        %s766 = scvt.s32.f32 %s765
        %v767 = vsel %vm747, %v612, 0.0
        %v768 = vsel %vm748, %v613, 0.0
        %v769 = vsel %vm749, %v614, 0.0
        %v770 = vsel %vm750, %v615, 0.0
        %v771 = vsel %vm751, %v616, 0.0
        %v772 = vsel %vm752, %v617, 0.0
        %v773 = vsel %vm753, %v618, 0.0
        %v774 = vsel %vm754, %v619, 0.0
        %v775 = vsel %vm755, %v620, 0.0
        %v776 = vsel %vm756, %v621, 0.0
        %v777 = vsel %vm757, %v622, 0.0
        %v778 = vsel %vm758, %v623, 0.0
        %v779 = vsel %vm759, %v624, 0.0
        %v780 = vsel %vm760, %v625, 0.0
        %v781 = vsel %vm761, %v626, 0.0
        %v782 = vsel %vm762, %v627, 0.0
        %v783 = vsel %vm747, %v628, 0.0
        %v784 = vsel %vm748, %v629, 0.0
        %v785 = vsel %vm749, %v630, 0.0
        %v786 = vsel %vm750, %v631, 0.0
        %v787 = vsel %vm751, %v632, 0.0
        %v788 = vsel %vm752, %v633, 0.0
        %v789 = vsel %vm753, %v634, 0.0
        %v790 = vsel %vm754, %v635, 0.0
        %v791 = vsel %vm755, %v636, 0.0
        %v792 = vsel %vm756, %v637, 0.0
        %v793 = vsel %vm757, %v638, 0.0
        %v794 = vsel %vm758, %v639, 0.0
        %v795 = vsel %vm759, %v640, 0.0
        %v796 = vsel %vm760, %v641, 0.0
        %v797 = vsel %vm761, %v642, 0.0
        %v798 = vsel %vm762, %v643, 0.0
        %v799 = vld [vmem:[#allocation3] sm:$0x1]
        %v800 = vadd.f32 %v783, %v784
        %v801 = vadd.f32 %v800, %v785
        %v802 = vadd.f32 %v801, %v786
        %v803 = vadd.f32 %v802, %v787
        %v804 = vadd.f32 %v803, %v788
        %v805 = vadd.f32 %v804, %v789
        %v806 = vadd.f32 %v805, %v790
        %v807 = vadd.f32 %v806, %v791
        %v808 = vadd.f32 %v807, %v792
        %v809 = vadd.f32 %v808, %v793
        %v810 = vadd.f32 %v809, %v794
        %v811 = vadd.f32 %v810, %v795
        %v812 = vadd.f32 %v811, %v796
        %v813 = vadd.f32 %v812, %v797
        %v814 = vadd.f32 %v813, %v798
        %815 = vadd.xlane.f32.xlu0 %v814
        %v816 = vpop.xlane.xlu0 %815
        %v817 = vrot.slane %v816, 4
        %v818 = vadd.f32 %v816, %v817
        %v819 = vrot.slane %v818, 2
        %v820 = vadd.f32 %v818, %v819
        %v821 = vrot.slane %v820, 1
        %v822 = vadd.f32 %v820, %v821
        %s823 = vtos %v822
        %v824 = vstv %s823
        %v825 = vmul.f32 %v824, 0.995
        %v826 = vadd.f32 %v767, %v768
        %v827 = vadd.f32 %v826, %v769
        %v828 = vadd.f32 %v827, %v770
        %v829 = vadd.f32 %v828, %v771
        %v830 = vadd.f32 %v829, %v772
        %v831 = vadd.f32 %v830, %v773
        %v832 = vadd.f32 %v831, %v774
        %v833 = vadd.f32 %v832, %v775
        %v834 = vadd.f32 %v833, %v776
        %v835 = vadd.f32 %v834, %v777
        %v836 = vadd.f32 %v835, %v778
        %v837 = vadd.f32 %v836, %v779
        %v838 = vadd.f32 %v837, %v780
        %v839 = vadd.f32 %v838, %v781
        %v840 = vadd.f32 %v839, %v782
        %841 = vadd.xlane.f32.xlu0 %v840
        %v842 = vpop.xlane.xlu0 %841
        %v843 = vrot.slane %v842, 4
        %v844 = vadd.f32 %v842, %v843
        %v845 = vrot.slane %v844, 2
        %v846 = vadd.f32 %v844, %v845
        %v847 = vrot.slane %v846, 1
        %v848 = vadd.f32 %v846, %v847
        %s849 = vtos %v848
        %v850 = vstv %s849
        %v851 = vmul.f32 %v850, 2.0
        %v852 = vsub.f32 %v825, %v851
        %v853 = vstv %s766
        %v854 = vadd.f32 %v852, %v853
        %v855 = vadd.f32 %v799, %v854
        %856 = vst.msk [vmem:[#allocation3] sm:$0x1] %vm672, %v855
      $region49: #{tpu_custom_call.1} parent=44 // pred_fallthru
        _
    $region45: #{tpu_custom_call.1} parent=1 // pred_fallthru
      _
    // Predicated region
    $region50: #{tpu_custom_call.1} parent=1 // pred_check
      _
    $region51: #{tpu_custom_call.1} parent=1 // pred_check_branch
      %858 = sbr.rel (%p54) target = $region53
    $region52: #{tpu_custom_call.1} parent=1 // pred_region
      %v859 = vld [vmem:[#allocation3] sm:$0x1]
      %v861 = vperm.slane %v859, 0
      %862 = vset.pattern.permute.xlu0 0
      %863 = vperm.xlu0 %862, %v861
      %v864 = vpop.permute.xlu0 %863
      %866 = vst [vmem:[#allocation9] sm:$0xff] %v864
    $region53: #{tpu_custom_call.1} parent=1 // pred_fallthru
      _
    // Predicated region
    $region54: #{tpu_custom_call.1} parent=1 // pred_check
      _
    $region55: #{tpu_custom_call.1} parent=1 // pred_check_branch
      %868 = sbr.rel (0) target = $region57
    $region56: #{tpu_custom_call.1} parent=1 // pred_region
      %870 = vsyncadd [#allocation6], 0
      %s872 = sshll.u32 [#allocation9], 4
      %s873 = int_to_ptr.vmem [resolvable:$true] %s872
      %s874 = sshll.u32 %s6, 4
      %s875 = int_to_ptr.hbm [resolvable:$true] %s874
      %877 = dma.vmem_to_hbm [thread:$0]  %s873, 128, %s875, [#allocation6]
    $region57: #{tpu_custom_call.1} parent=1 // pred_fallthru
      _
    // Predicated region
    $region58: #{tpu_custom_call.1} parent=1 // pred_check
      _
    $region59: #{tpu_custom_call.1} parent=1 // pred_check_branch
      %879 = sbr.rel (0) target = $region61
    $region60: #{tpu_custom_call.1} parent=1 // pred_region
      %881 = dma.done [#allocation6], 128
    $region61: #{tpu_custom_call.1} parent=1 // pred_fallthru
      _
    %882 = vsyncpa [#allocation5], 1
    %883 = vsyncpa [#allocation8], 1
    %884 = vsyncpa [#allocation6], 1

</llo_original>
